<compile_context>
chip_gen: v7x
topology: tpu7x:2x2x1
jax: 0.10.0
libtpu: 0.0.40
codegen_flags: <defaults>
</compile_context>

<pallas_src>
import jax
import jax.numpy as jnp
from jax.experimental import pallas as pl
from jax.experimental.pallas import tpu as pltpu

LANE = 128        # lane width of a vreg; last dim of every block
TILE_ROWS = 512   # 512x128 f32 block = 256 KiB; sublane-legal for all dtypes


def _add_kernel(a_ref, b_ref, o_ref):
    o_ref[...] = a_ref[...] + b_ref[...]


def _dim_semantics(num_blocks: int):
    """Grid-axis semantics: CORE_PARALLEL only where it actually helps (v7x,
    even block count >= 4 so each TensorCore still pipelines); ARBITRARY is the
    always-safe default elsewhere (measured identical to 'parallel')."""
    try:
        kind = jax.devices()[0].device_kind.lower()
    except Exception:
        kind = ""
    is_v7 = ("v7" in kind) or ("7x" in kind)
    if is_v7 and num_blocks >= 4 and num_blocks % 2 == 0:
        return (pltpu.CORE_PARALLEL,)
    return (pltpu.ARBITRARY,)


def _pallas_add(a: jnp.ndarray, b: jnp.ndarray) -> jnp.ndarray:
    assert a.shape == b.shape and a.dtype == b.dtype
    orig_shape = a.shape
    n_elem = a.size
    itemsize = jnp.dtype(a.dtype).itemsize

    if n_elem % LANE != 0:
        # Rarely-hit ragged fallback (never for this module's shapes): whole
        # array as one full-shape block.  No padding, no extra HBM passes.
        return pl.pallas_call(
            _add_kernel,
            out_shape=jax.ShapeDtypeStruct(orig_shape, a.dtype),
        )(a, b)

    # Lane-dense 2D view (rows, 128): a pure bitcast inside jit, no HBM traffic.
    rows = n_elem // LANE
    a2 = a.reshape(rows, LANE)
    b2 = b.reshape(rows, LANE)

    # Fixed tile; a ragged last block (rows % tile_rows != 0, rows % 8 != 0)
    # is handled by Mosaic's masked edge-block handling -> never pad inputs.
    tile_rows = rows if rows < TILE_ROWS else TILE_ROWS
    num_blocks = pl.cdiv(rows, tile_rows)

    out2 = pl.pallas_call(
        _add_kernel,
        out_shape=jax.ShapeDtypeStruct((rows, LANE), a.dtype),
        grid_spec=pltpu.PrefetchScalarGridSpec(
            num_scalar_prefetch=0,
            grid=(num_blocks,),
            in_specs=[
                pl.BlockSpec((tile_rows, LANE), lambda i: (i, 0)),
                pl.BlockSpec((tile_rows, LANE), lambda i: (i, 0)),
            ],
            out_specs=pl.BlockSpec((tile_rows, LANE), lambda i: (i, 0)),
        ),
        # The add's result replaces operand 0 in the residual dataflow; reuse
        # its HBM buffer instead of allocating a new output.
        input_output_aliases={0: 0},
        compiler_params=pltpu.CompilerParams(
            dimension_semantics=_dim_semantics(num_blocks),
            # Allow XLA to fuse both operands' producers into the input reads.
            allow_input_fusion=[True, True],
        ),
        cost_estimate=pl.CostEstimate(
            flops=n_elem,
            transcendentals=0,
            bytes_accessed=3 * n_elem * itemsize,
        ),
    )(a2, b2)

    return out2.reshape(orig_shape)


# Donate operand 0 so the in-kernel aliasing is honored end-to-end (XLA does
# not have to insert a protective copy of a read-only parameter).
pallas_add = jax.jit(_pallas_add, donate_argnums=(0,))


def _run_case(shape, key):
    k1, k2 = jax.random.split(key)
    x448 = jax.random.normal(k1, shape, dtype=jnp.float32)
    x440 = jax.random.normal(k2, shape, dtype=jnp.float32)
    ref = x448 + x440                      # reference BEFORE x448 is donated
    jax.block_until_ready(ref)
    y = pallas_add(x448, x440)
    jax.block_until_ready(y)
    assert y.shape == ref.shape and y.dtype == ref.dtype
    assert bool(jnp.allclose(y, ref, atol=1e-6, rtol=1e-6)), shape
    return y


if __name__ == "__main__":
    key = jax.random.PRNGKey(0)
    keys = jax.random.split(key, 3)

    # Small shape consistent with the module (channels 1024 -> 64):
    # 12544 elems = 98 x 128 rows (rows not a multiple of 8 -> full-block path).
    _run_case((1, 64, 14, 14), keys[0])

    # Spec'd shape: 1568 x 128 rows -> grid of 4 blocks of 512 rows with a
    # ragged (masked) 32-row last block.
    _run_case((1, 1024, 14, 14), keys[1])

    # Ragged stress test from the review: 539 x 128 rows -> grid = 2 with a
    # masked 27-row edge block (neither a tile nor a sublane multiple).
    _run_case((1, 352, 14, 14), keys[2])

    print("KERNEL_OK")
</pallas_src>

<mosaic_0001>
module attributes {stable_mosaic.version = 11 : i64} {
  func.func @_add_kernel(%arg0: i32, %arg1: memref<98x128xf32, #tpu.memory_space<vmem>>, %arg2: memref<98x128xf32, #tpu.memory_space<vmem>>, %arg3: memref<98x128xf32, #tpu.memory_space<vmem>>) attributes {dimension_semantics = [#tpu.dimension_semantics<arbitrary>], iteration_bounds = array<i64: 1>, scalar_prefetch = 0 : i64, scratch_operands = 0 : i64, tpu.core_type = #tpu.core_type<tc>, window_params = [{transform_indices = @transform_0, window_bounds = array<i64: 98, 128>}, {transform_indices = @transform_1, window_bounds = array<i64: 98, 128>}, {transform_indices = @transform_2, window_bounds = array<i64: 98, 128>}]} {
    %c0 = arith.constant 0 : index
    %c0_0 = arith.constant 0 : index
    %0 = vector.load %arg1[%c0, %c0_0] : memref<98x128xf32, #tpu.memory_space<vmem>>, vector<98x128xf32>
    %c0_1 = arith.constant 0 : index
    %c0_2 = arith.constant 0 : index
    %1 = vector.load %arg2[%c0_1, %c0_2] : memref<98x128xf32, #tpu.memory_space<vmem>>, vector<98x128xf32>
    %2 = arith.addf %0, %1 : vector<98x128xf32>
    %c0_3 = arith.constant 0 : index
    %c0_4 = arith.constant 0 : index
    %3 = vector.load %arg3[%c0_3, %c0_4] : memref<98x128xf32, #tpu.memory_space<vmem>>, vector<98x128xf32>
    tpu.vector_store %arg3[%c0_3, %c0_4], %2 {strides = array<i32>} : memref<98x128xf32, #tpu.memory_space<vmem>>, vector<98x128xf32>,
    return
  }
  func.func @transform_0(%arg0: i32) -> (i32, i32) {
    %c0_i32 = arith.constant 0 : i32
    %c0_i32_0 = arith.constant 0 : i32
    return %arg0, %c0_i32 : i32, i32
  }
  func.func @transform_1(%arg0: i32) -> (i32, i32) {
    %c0_i32 = arith.constant 0 : i32
    %c0_i32_0 = arith.constant 0 : i32
    return %arg0, %c0_i32 : i32, i32
  }
  func.func @transform_2(%arg0: i32) -> (i32, i32) {
    %c0_i32 = arith.constant 0 : i32
    %c0_i32_0 = arith.constant 0 : i32
    return %arg0, %c0_i32 : i32, i32
  }
}

</mosaic_0001>

<llo_original>
// kernel: _pallas_add.1
$region0: #{_pallas_add.1}
  #allocation0 [shape = 'u32[]', space=smem, size = 0x4, offset = 0x4, fixed_abs, tag = 'smem constant byte address 0x4 - core index']
  #allocation1 [shape = 'u32[144,128]{1,0:T(1,128)}', space=vmem, size = 0x12000, scoped, tag = 'internal scratch']
  %s0 = inlined_call_operand.vmem [shape: f32[98,128], index: 0, kind: input, shape index: {}, may-alias: {0,2}]
  %s1 = inlined_call_operand.vmem [shape: f32[98,128], index: 1, kind: input, shape index: {}]
  %s2 = inlined_call_operand.vmem [shape: f32[98,128], index: 2, kind: output, shape index: {}, may-alias: {0,2}]
  %s3 = sld [smem:[#allocation0]]
  $region18: #{_pallas_add.1} parent=0
    _
  %s5 = ssub.s32 1, %s3
  %s6 = scalar_select 0, %s5, %s3
  // Predicated region
  $region2: #{_pallas_add.1} parent=0 // pred_check
    _
  $region3: #{_pallas_add.1} parent=0 // pred_check_branch
    %8 = sbr.rel (0) target = $region5
  $region4: #{_pallas_add.1} parent=0 // pred_region
    _
  $region5: #{_pallas_add.1} parent=0 // pred_fallthru
    _
  // Predicated region
  $region6: #{_pallas_add.1} parent=0 // pred_check
    _
  $region7: #{_pallas_add.1} parent=0 // pred_check_branch
    %10 = sbr.rel (0) target = $region9
  $region8: #{_pallas_add.1} parent=0 // pred_region
    _
  $region9: #{_pallas_add.1} parent=0 // pred_fallthru
    _
  %v11 = vld [vmem:[%s0] sm:$0xff]
  %v12 = vld [vmem:[%s0 + $0x8] sm:$0xff]
  %v13 = vld [vmem:[%s0 + $0x10] sm:$0xff]
  %v14 = vld [vmem:[%s0 + $0x18] sm:$0xff]
  %v15 = vld [vmem:[%s0 + $0x20] sm:$0xff]
  %v16 = vld [vmem:[%s0 + $0x28] sm:$0xff]
  %v17 = vld [vmem:[%s0 + $0x30] sm:$0xff]
  %v18 = vld [vmem:[%s0 + $0x38] sm:$0xff]
  %v19 = vld [vmem:[%s0 + $0x40] sm:$0xff]
  %v20 = vld [vmem:[%s0 + $0x48] sm:$0xff]
  %v21 = vld [vmem:[%s0 + $0x50] sm:$0xff]
  %v22 = vld [vmem:[%s0 + $0x58] sm:$0xff]
  %v23 = vld [vmem:[%s0 + $0x60] sm:$0x3]
  %v24 = vld [vmem:[%s1] sm:$0xff]
  %v25 = vld [vmem:[%s1 + $0x8] sm:$0xff]
  %v26 = vld [vmem:[%s1 + $0x10] sm:$0xff]
  %v27 = vld [vmem:[%s1 + $0x18] sm:$0xff]
  %v28 = vld [vmem:[%s1 + $0x20] sm:$0xff]
  %v29 = vld [vmem:[%s1 + $0x28] sm:$0xff]
  %v30 = vld [vmem:[%s1 + $0x30] sm:$0xff]
  %v31 = vld [vmem:[%s1 + $0x38] sm:$0xff]
  %v32 = vld [vmem:[%s1 + $0x40] sm:$0xff]
  %v33 = vld [vmem:[%s1 + $0x48] sm:$0xff]
  %v34 = vld [vmem:[%s1 + $0x50] sm:$0xff]
  %v35 = vld [vmem:[%s1 + $0x58] sm:$0xff]
  %v36 = vld [vmem:[%s1 + $0x60] sm:$0x3]
  %v37 = vadd.f32 %v11, %v24
  %v38 = vadd.f32 %v12, %v25
  %v39 = vadd.f32 %v13, %v26
  %v40 = vadd.f32 %v14, %v27
  %v41 = vadd.f32 %v15, %v28
  %v42 = vadd.f32 %v16, %v29
  %v43 = vadd.f32 %v17, %v30
  %v44 = vadd.f32 %v18, %v31
  %v45 = vadd.f32 %v19, %v32
  %v46 = vadd.f32 %v20, %v33
  %v47 = vadd.f32 %v21, %v34
  %v48 = vadd.f32 %v22, %v35
  %v49 = vadd.f32 %v23, %v36
  %50 = vst [vmem:[%s2] sm:$0xff] %v37
  %51 = vst [vmem:[%s2 + $0x8] sm:$0xff] %v38
  %52 = vst [vmem:[%s2 + $0x10] sm:$0xff] %v39
  %53 = vst [vmem:[%s2 + $0x18] sm:$0xff] %v40
  %54 = vst [vmem:[%s2 + $0x20] sm:$0xff] %v41
  %55 = vst [vmem:[%s2 + $0x28] sm:$0xff] %v42
  %56 = vst [vmem:[%s2 + $0x30] sm:$0xff] %v43
  %57 = vst [vmem:[%s2 + $0x38] sm:$0xff] %v44
  %58 = vst [vmem:[%s2 + $0x40] sm:$0xff] %v45
  %59 = vst [vmem:[%s2 + $0x48] sm:$0xff] %v46
  %60 = vst [vmem:[%s2 + $0x50] sm:$0xff] %v47
  %61 = vst [vmem:[%s2 + $0x58] sm:$0xff] %v48
  %62 = vst [vmem:[%s2 + $0x60] sm:$0x3] %v49
  // Predicated region
  $region10: #{_pallas_add.1} parent=0 // pred_check
    _
  $region11: #{_pallas_add.1} parent=0 // pred_check_branch
    %64 = sbr.rel (0) target = $region13
  $region12: #{_pallas_add.1} parent=0 // pred_region
    _
  $region13: #{_pallas_add.1} parent=0 // pred_fallthru
    _
  // Predicated region
  $region14: #{_pallas_add.1} parent=0 // pred_check
    _
  $region15: #{_pallas_add.1} parent=0 // pred_check_branch
    %66 = sbr.rel (0) target = $region17
  $region16: #{_pallas_add.1} parent=0 // pred_region
    _
  $region17: #{_pallas_add.1} parent=0 // pred_fallthru
    _

</llo_original>
